<compile_context>
chip_gen: v6e
topology: v6e:2x2x1
jax: 0.10.0
libtpu: 0.0.40
codegen_flags: <defaults>
</compile_context>

<pallas_src>
import math
import random

import numpy as np
import jax
import jax.numpy as jnp
from jax.experimental import pallas as pl
from jax.experimental.pallas import tpu as pltpu


# ----------------------------------------------------------------------------
# host-side helpers (mirror the PyTorch module)
# ----------------------------------------------------------------------------
def get_random(value, distribution):
    if distribution == 'normal':
        value = np.random.normal(0, value)
    elif distribution == 'uniform':
        value = random.randint(-value, value)
    elif distribution == 'positive-negative':
        value = value if random.random() < 0.5 else -value
    elif distribution == 'constant':
        pass
    else:
        raise ValueError(distribution)
    return value


def _pil_rotate_geometry(w, h, angle_deg):
    """PIL Image.rotate(angle, expand=True): output size + dst->src affine."""
    angle = angle_deg % 360.0
    rotn_center = (w / 2.0, h / 2.0)
    a = -math.radians(angle)
    matrix = [round(math.cos(a), 15), round(math.sin(a), 15), 0.0,
              round(-math.sin(a), 15), round(math.cos(a), 15), 0.0]

    def transform(x, y, m):
        (ma, mb, mc, md, me, mf) = m
        return ma * x + mb * y + mc, md * x + me * y + mf

    matrix[2], matrix[5] = transform(-rotn_center[0], -rotn_center[1], matrix)
    matrix[2] += rotn_center[0]
    matrix[5] += rotn_center[1]

    # expand=True: bounding box of the transformed corners
    xx, yy = [], []
    for cx, cy in ((0, 0), (w, 0), (w, h), (0, h)):
        tx, ty = transform(cx, cy, matrix)
        xx.append(tx)
        yy.append(ty)
    nw = math.ceil(max(xx)) - math.floor(min(xx))
    nh = math.ceil(max(yy)) - math.floor(min(yy))
    matrix[2], matrix[5] = transform(-(nw - w) / 2.0, -(nh - h) / 2.0, matrix)
    return nw, nh, matrix


def _round_up(x, m):
    return ((x + m - 1) // m) * m


def _src_coords_np(w_in, h_in, nw, nh, matrix):
    """Source coords + in-bounds mask for every output pixel (host / numpy)."""
    a, b, c, d, e, f = matrix
    jx = np.arange(nw, dtype=np.float64) + 0.5      # output pixel centers
    iy = np.arange(nh, dtype=np.float64) + 0.5
    xs = a * jx[None, :] + b * iy[:, None] + c      # (nh, nw) source x
    ys = d * jx[None, :] + e * iy[:, None] + f      # (nh, nw) source y
    inb = (xs >= 0.0) & (xs < w_in) & (ys >= 0.0) & (ys < h_in)
    return xs, ys, inb


def _bilinear_taps_np(xs, ys, inb, w_in, h_in):
    """4 bilinear taps per output pixel: (4, P) flat source ids + weights."""
    xb, yb = xs - 0.5, ys - 0.5
    x0, y0 = np.floor(xb), np.floor(yb)
    fx, fy = xb - x0, yb - y0
    q_list, w_list = [], []
    for dy, wy in ((0, 1.0 - fy), (1, fy)):
        yy = np.clip(y0 + dy, 0, h_in - 1).astype(np.int64)
        for dx, wx in ((0, 1.0 - fx), (1, fx)):
            xx = np.clip(x0 + dx, 0, w_in - 1).astype(np.int64)
            q_list.append((yy * w_in + xx).reshape(-1))
            w_list.append((wy * wx * inb).reshape(-1))  # OOB -> weight 0 (fill=0)
    return np.stack(q_list), np.stack(w_list)           # (4, P), (4, P)


def _build_block_weights(taps_q, taps_w, P, p_pad, tile_q, tile_p):
    """Block-compress the resample matrix (built once on the host).

    Returns:
      w_blocks : (n_p_tiles * max_k, tile_q, tile_p) bf16 weight blocks
      sched    : (n_p_tiles * max_k,) int32 -- contributing q-tile id per slot
      max_k    : reduction steps per output tile (padded slots are all-zero)
    """
    n_p_tiles = p_pad // tile_p
    per_tile_qtiles = []
    for pt in range(n_p_tiles):
        lo, hi = pt * tile_p, min((pt + 1) * tile_p, P)
        if lo >= P:
            per_tile_qtiles.append(np.zeros((0,), np.int64))
            continue
        nz = taps_w[:, lo:hi] != 0.0
        per_tile_qtiles.append(np.unique((taps_q[:, lo:hi] // tile_q)[nz]))
    max_k = max(1, max(len(q) for q in per_tile_qtiles))

    sched = np.zeros((n_p_tiles, max_k), np.int32)     # pad -> q-tile 0, zero W
    w_blocks = np.zeros((n_p_tiles, max_k, tile_q, tile_p), np.float32)
    for pt in range(n_p_tiles):
        lo, hi = pt * tile_p, min((pt + 1) * tile_p, P)
        for slot, qt in enumerate(per_tile_qtiles[pt]):
            sched[pt, slot] = qt
            for t in range(4):
                qg = taps_q[t, lo:hi]
                wg = taps_w[t, lo:hi]
                sel = (qg // tile_q == qt) & (wg != 0.0)
                rows = (qg[sel] - qt * tile_q).astype(np.int64)
                cols = np.nonzero(sel)[0]               # local output index
                np.add.at(w_blocks[pt, slot], (rows, cols),
                          wg[sel].astype(np.float32))
    w_blocks = w_blocks.reshape(n_p_tiles * max_k, tile_q, tile_p)
    return (jnp.asarray(w_blocks, dtype=jnp.bfloat16),
            jnp.asarray(sched.reshape(-1)), max_k)


def _pick_tiles(Q, P):
    """Per-generation tile sizes (VMEM capacity), clamped to the problem."""
    try:
        vmem = pltpu.get_tpu_info().vmem_capacity_bytes
    except Exception:
        vmem = 64 << 20
    if vmem >= (100 << 20):              # v5e / v6e: 128 MiB physical VMEM
        tile_q, tile_p, vmem_limit = 1024, 2048, 96 << 20
    else:                                # v7x: 64 MiB per TensorCore
        tile_q, tile_p, vmem_limit = 512, 2048, 40 << 20
    # clamp to the padded problem size
    tile_q = min(tile_q, _round_up(Q, 128))
    # keep >= 4 output tiles when possible (megacore / both v7x TCs get work)
    tile_p = min(tile_p, max(128, _round_up((P + 3) // 4, 128)))
    return tile_q, tile_p, vmem_limit


# ----------------------------------------------------------------------------
# Pallas kernel: block-sparse "gather as matmul" bilinear resample
# ----------------------------------------------------------------------------
def _rotate_image_kernel(sched_ref, img_ref, w_ref, out_ref):
    del sched_ref  # only used by the index_maps (scalar prefetch)
    k = pl.program_id(1)

    # out_ref's index_map ignores the reduction axis, so its (C_pad, tile_p)
    # block stays resident in VMEM across k: accumulate into it directly
    # (no scratch accumulator, no final copy).
    @pl.when(k == 0)
    def _():
        out_ref[...] = jnp.zeros_like(out_ref)

    out_ref[...] += jnp.dot(img_ref[...], w_ref[0].astype(jnp.float32),
                            preferred_element_type=jnp.float32)


def rotate_pallas(image, label, angle, fill_value, *, tile_p=None, tile_q=None):
    """Pallas equivalent of Rotate.forward for one (image, label) pair.

    image: (C, H, W) float32; label: (H, W) integer class map.
    Returns (rotated_image (C, nh, nw), rotated_label (nh, nw)).
    """
    C, H, W = image.shape
    assert label.shape == (H, W)

    nw, nh, matrix = _pil_rotate_geometry(W, H, float(angle))
    Q, P = H * W, nh * nw

    auto_q, auto_p, vmem_limit = _pick_tiles(Q, P)
    tile_q = auto_q if tile_q is None else tile_q
    tile_p = auto_p if tile_p is None else tile_p

    q_pad = _round_up(Q, tile_q)               # reduction dim
    p_pad = _round_up(P, tile_p)               # output dim, lane-dense
    n_p_tiles = p_pad // tile_p

    # host-side geometry, shared by the weight build and the label gather
    xs, ys, inb = _src_coords_np(W, H, nw, nh, matrix)

    # ---- label: NEAREST resample as a plain, exact XLA gather (no kernel) ---
    xn = np.clip(np.floor(xs), 0, W - 1).astype(np.int32)
    yn = np.clip(np.floor(ys), 0, H - 1).astype(np.int32)
    lbl_rot = jnp.where(jnp.asarray(inb),
                        label[jnp.asarray(yn), jnp.asarray(xn)],
                        jnp.asarray(fill_value, dtype=label.dtype))

    # ---- image: bilinear resample as a block-sparse MXU matmul --------------
    taps_q, taps_w = _bilinear_taps_np(xs, ys, inb, W, H)
    w_blocks, sched, max_k = _build_block_weights(
        taps_q, taps_w, P, p_pad, tile_q, tile_p)

    C_pad = max(8, _round_up(C, 8))            # full f32 sublane tile
    img_flat = jnp.pad(image.reshape(C, Q).astype(jnp.float32),
                       ((0, C_pad - C), (0, q_pad - Q)))

    grid_spec = pltpu.PrefetchScalarGridSpec(
        num_scalar_prefetch=1,
        grid=(n_p_tiles, max_k),               # reduction (k) last
        in_specs=[
            # source-pixel tile chosen by the prefetched schedule
            pl.BlockSpec((C_pad, tile_q),
                         lambda p, k, sched: (0, sched[p * max_k + k])),
            # matching block-compressed bilinear weights (bf16)
            pl.BlockSpec((1, tile_q, tile_p),
                         lambda p, k, sched: (p * max_k + k, 0, 0)),
        ],
        out_specs=pl.BlockSpec((C_pad, tile_p),
                               lambda p, k, sched: (0, p)),
    )

    img_out = pl.pallas_call(
        _rotate_image_kernel,
        out_shape=jax.ShapeDtypeStruct((C_pad, p_pad), jnp.float32),
        grid_spec=grid_spec,
        compiler_params=pltpu.CompilerParams(
            dimension_semantics=("parallel", "arbitrary"),
            vmem_limit_bytes=vmem_limit),
    )(sched, img_flat, w_blocks)

    img_rot = img_out[:C, :P].reshape(C, nh, nw).astype(image.dtype)
    return img_rot, lbl_rot


class Rotate:
    """Pallas port of the PyTorch Rotate segmentation transform."""

    def __init__(self, angle, fill_value, distribution='constant'):
        self.angle = angle
        self.fill_value = fill_value
        self.distribution = distribution

    def __call__(self, image, label):
        angle = get_random(self.angle, self.distribution)   # host RNG, as in torch
        return rotate_pallas(image, label, angle, self.fill_value)


# ----------------------------------------------------------------------------
# host-JAX reference (same sampling convention, direct gather)
# ----------------------------------------------------------------------------
def _rotate_reference(image, label, angle, fill_value):
    C, H, W = image.shape
    nw, nh, matrix = _pil_rotate_geometry(W, H, float(angle))
    xs, ys, inb = _src_coords_np(W, H, nw, nh, matrix)

    xn = np.clip(np.floor(xs), 0, W - 1).astype(np.int32)
    yn = np.clip(np.floor(ys), 0, H - 1).astype(np.int32)
    lbl = jnp.where(jnp.asarray(inb),
                    label[jnp.asarray(yn), jnp.asarray(xn)],
                    jnp.asarray(fill_value, dtype=label.dtype))

    xb, yb = xs - 0.5, ys - 0.5
    x0, y0 = np.floor(xb), np.floor(yb)
    fx, fy = xb - x0, yb - y0
    inb_f = jnp.asarray(inb.astype(np.float32))
    img = jnp.zeros((C, nh, nw), jnp.float32)
    for dy, wy in ((0, 1.0 - fy), (1, fy)):
        yy = np.clip(y0 + dy, 0, H - 1).astype(np.int32)
        for dx, wx in ((0, 1.0 - fx), (1, fx)):
            xx = np.clip(x0 + dx, 0, W - 1).astype(np.int32)
            w = jnp.asarray((wy * wx).astype(np.float32)) * inb_f
            img = img + w[None] * image[:, jnp.asarray(yy), jnp.asarray(xx)]
    return img.astype(image.dtype), lbl


if __name__ == "__main__":
    random.seed(0)
    np.random.seed(0)
    key = jax.random.PRNGKey(0)
    k_img, k_lbl = jax.random.split(key)

    C, H, W = 3, 16, 16
    angle = 30.0
    fill_value = 255

    image = jax.random.normal(k_img, (C, H, W), dtype=jnp.float32)
    label = jax.random.randint(k_lbl, (H, W), 0, 5, dtype=jnp.int32)

    rot = Rotate(angle, fill_value, distribution='constant')
    img_r, lbl_r = rot(image, label)
    jax.block_until_ready((img_r, lbl_r))

    ref_img, ref_lbl = _rotate_reference(image, label, angle, fill_value)
    nh, nw = ref_lbl.shape
    assert img_r.shape == (C, nh, nw), (img_r.shape, (C, nh, nw))
    assert lbl_r.shape == (nh, nw), (lbl_r.shape, (nh, nw))
    assert jnp.array_equal(lbl_r, ref_lbl), "label rotation mismatch"
    err = float(jnp.max(jnp.abs(img_r - ref_img)))
    assert err < 5e-2, err

    print("KERNEL_OK")
</pallas_src>

<mosaic_0001>
module attributes {stable_mosaic.version = 11 : i64} {
  func.func @_rotate_image_kernel(%arg0: i32, %arg1: i32, %arg2: memref<4xi32, #tpu.memory_space<smem>>, %arg3: memref<8x256xf32, #tpu.memory_space<vmem>>, %arg4: memref<1x256x128xbf16, #tpu.memory_space<vmem>>, %arg5: memref<8x128xf32, #tpu.memory_space<vmem>>) attributes {dimension_semantics = [#tpu.dimension_semantics<parallel>, #tpu.dimension_semantics<arbitrary>], iteration_bounds = array<i64: 4, 1>, scalar_prefetch = 1 : i64, scratch_operands = 0 : i64, tpu.core_type = #tpu.core_type<tc>, window_params = [{transform_indices = @transform_0, window_bounds = array<i64: 8, 256>}, {transform_indices = @transform_1, window_bounds = array<i64: 1, 256, 128>}, {transform_indices = @transform_2, window_bounds = array<i64: 8, 128>}]} {
    %c0_i32 = arith.constant 0 : i32
    %0 = arith.cmpi eq, %arg1, %c0_i32 : i32
    %1 = arith.extui %0 : i1 to i32
    %c0_i32_0 = arith.constant 0 : i32
    %2 = arith.cmpi ne, %1, %c0_i32_0 : i32
    scf.if %2 {
      %cst_9 = arith.constant 0.000000e+00 : f32
      %11 = vector.broadcast %cst_9 : f32 to vector<8x128xf32>
      %c0_10 = arith.constant 0 : index
      %c0_11 = arith.constant 0 : index
      %12 = vector.load %arg5[%c0_10, %c0_11] : memref<8x128xf32, #tpu.memory_space<vmem>>, vector<8x128xf32>
      tpu.vector_store %arg5[%c0_10, %c0_11], %11 {strides = array<i32>} : memref<8x128xf32, #tpu.memory_space<vmem>>, vector<8x128xf32>,
    } else {
    }
    %c0 = arith.constant 0 : index
    %c0_1 = arith.constant 0 : index
    %3 = vector.load %arg5[%c0, %c0_1] : memref<8x128xf32, #tpu.memory_space<vmem>>, vector<8x128xf32>
    %c0_2 = arith.constant 0 : index
    %c0_3 = arith.constant 0 : index
    %4 = vector.load %arg3[%c0_2, %c0_3] : memref<8x256xf32, #tpu.memory_space<vmem>>, vector<8x256xf32>
    %c0_4 = arith.constant 0 : index
    %c0_5 = arith.constant 0 : index
    %c0_6 = arith.constant 0 : index
    %5 = vector.load %arg4[%c0_4, %c0_5, %c0_6] : memref<1x256x128xbf16, #tpu.memory_space<vmem>>, vector<1x256x128xbf16>
    %6 = vector.shape_cast %5 : vector<1x256x128xbf16> to vector<256x128xbf16>
    %7 = arith.extf %6 : vector<256x128xbf16> to vector<256x128xf32>
    %cst = arith.constant dense<0.000000e+00> : vector<8x128xf32>
    %8 = tpu.matmul %4, %7, %cst {dimension_numbers = #tpu.dot_dimension_numbers<[1], [0], [0], [1], [0, 0, 1, 1], [], []>} : vector<8x256xf32>, vector<256x128xf32>, vector<8x128xf32> -> vector<8x128xf32>
    %9 = arith.addf %3, %8 : vector<8x128xf32>
    %c0_7 = arith.constant 0 : index
    %c0_8 = arith.constant 0 : index
    %10 = vector.load %arg5[%c0_7, %c0_8] : memref<8x128xf32, #tpu.memory_space<vmem>>, vector<8x128xf32>
    tpu.vector_store %arg5[%c0_7, %c0_8], %9 {strides = array<i32>} : memref<8x128xf32, #tpu.memory_space<vmem>>, vector<8x128xf32>,
    return
  }
  func.func @transform_0(%arg0: i32, %arg1: i32, %arg2: memref<4xi32, #tpu.memory_space<smem>>) -> (i32, i32) {
    %c1_i32 = arith.constant 1 : i32
    %0 = arith.muli %arg0, %c1_i32 : i32
    %1 = arith.addi %0, %arg1 : i32
    %2 = arith.index_cast %1 : i32 to index
    %3 = memref.load %arg2[%2] : memref<4xi32, #tpu.memory_space<smem>>
    %c0_i32 = arith.constant 0 : i32
    %c0_i32_0 = arith.constant 0 : i32
    return %c0_i32, %3 : i32, i32
  }
  func.func @transform_1(%arg0: i32, %arg1: i32, %arg2: memref<4xi32, #tpu.memory_space<smem>>) -> (i32, i32, i32) {
    %c1_i32 = arith.constant 1 : i32
    %0 = arith.muli %arg0, %c1_i32 : i32
    %1 = arith.addi %0, %arg1 : i32
    %c0_i32 = arith.constant 0 : i32
    %c0_i32_0 = arith.constant 0 : i32
    %c0_i32_1 = arith.constant 0 : i32
    return %1, %c0_i32, %c0_i32_0 : i32, i32, i32
  }
  func.func @transform_2(%arg0: i32, %arg1: i32, %arg2: memref<4xi32, #tpu.memory_space<smem>>) -> (i32, i32) {
    %c0_i32 = arith.constant 0 : i32
    %c0_i32_0 = arith.constant 0 : i32
    return %c0_i32, %arg0 : i32, i32
  }
}

</mosaic_0001>

<llo_original>
// kernel: tpu_custom_call.1
$region0: #{tpu_custom_call.1}
  #allocation0 [shape = 'u32[]', space=smem, size = 0x4, offset = 0x4, fixed_abs, tag = 'smem constant byte address 0x4 - core index']
  #allocation1 [shape = 'u32[144,128]{1,0:T(1,128)}', space=vmem, size = 0x12000, scoped, tag = 'internal scratch']
  #allocation2 [shape = 's32[1]{0}', space=sflag, size = 0x4, scoped, tag = 'scoped memory for tpu_custom_call.1']
  #allocation3 [shape = 'u8[512]{0}', space=smem, size = 0x200, scoped, tag = 'prefetched SMEM operand 0']
  %s0 = inlined_call_operand.hbm [shape: s32[4], index: 0, kind: input, shape index: {}]
  %s1 = inlined_call_operand.hbm [shape: f32[8,256], index: 1, kind: input, shape index: {}]
  %s2 = inlined_call_operand.hbm [shape: bf16[4,256,128], index: 2, kind: input, shape index: {}]
  %s3 = inlined_call_operand.hbm [shape: f32[8,512], index: 3, kind: output, shape index: {}]
  %s4 = sld [smem:[#allocation0]]
  $region53: #{tpu_custom_call.1} parent=0
    _
  %s6 = ssub.s32 1, %s4
  %s7 = scalar_select 0, %s6, %s4
  %9 = dma.hbm_to_smem %s0, 16, [#allocation3], [#allocation2]
  %10 = dma.done [#allocation2], 16
  %11 = sfence
  $region1: #{tpu_custom_call.1} parent=0
    #allocation4 [shape = 'u8[16384]{0}', space=vmem, size = 0x4000, scoped, tag = 'input window, operand 1']
    #allocation5 [shape = 's32[2]{0}', space=sflag, size = 0x8, scoped, tag = 'scoped memory for tpu_custom_call.1']
    #allocation6 [shape = 's32[2]{0}', space=sflag, size = 0x8, scoped, tag = 'scoped memory for tpu_custom_call.1']
    #allocation7 [shape = 'u8[131072]{0}', space=vmem, size = 0x20000, scoped, tag = 'input window, operand 2']
    #allocation8 [shape = 's32[2]{0}', space=sflag, size = 0x8, scoped, tag = 'scoped memory for tpu_custom_call.1']
    #allocation9 [shape = 'u8[8192]{0}', space=vmem, size = 0x2000, scoped, tag = 'output window, operand 0']
    %12 = vsyncpa [#allocation5], 0
    %s13 = scalar_lea.sflag [#allocation5], 1
    %14 = vsyncpa %s13, 0
    %15 = vsyncpa [#allocation8], 0
    %s16 = scalar_lea.sflag [#allocation8], 1
    %17 = vsyncpa %s16, 0
    %18 = vsyncpa [#allocation6], 0
    %s19 = scalar_lea.sflag [#allocation6], 1
    %20 = vsyncpa %s19, 0
    loop: start=0, step=1, limit=6
    $region2: #{tpu_custom_call.1} parent=1 // loop_pre_header
      _
    $region3: #{tpu_custom_call.1} parent=1 // loop_header
      %s22 = sphi 0, %s26
      %p23 = scmp.ge.s32.totalorder %s22, 6
      %s29 = sphi 0, %s41
      %s30 = sphi 0, %s37
      %s31 = sphi 0, %s29
      %s32 = sphi 0, %s30
      %s33 = sphi 0, %s31
      %s34 = sphi 0, %s32
      %s48 = sphi 0, %s50
      %s51 = sphi 0, %s48
      %s52 = sphi 0, %s51
      %s68 = sphi 0, %s52
      %s76 = sphi 0, %s78
      %s79 = sphi 0, %s76
      %s80 = sphi 0, %s79
      %s96 = sphi 0, %s80
      %s102 = sphi 0, %s104
      %s105 = sphi 0, %s102
      %s106 = sphi 0, %s105
      %s122 = sphi 0, %s106
    $region4: #{tpu_custom_call.1} parent=1 // loop_header_branch
      %25 = sbr.rel (%p23) target = $region8
    $region5: #{tpu_custom_call.1} parent=1 // loop_body
      %s27 = ssub.s32 %s22, 1
      %s28 = ssub.s32 %s22, 2
      %s35 = sadd.s32 1, %s30
      %p36 = scmp.ge.s32.totalorder %s35, 1
      %s37 = scalar_select %p36, 0, %s35
      %s38 = sadd.s32 1, %s29
      %s39 = scalar_select %p36, %s38, %s29
      %p40 = scmp.ge.s32.totalorder %s39, 4
      %s41 = scalar_select %p40, 0, %s39
      %s42 = sadd.s32 %s29, %s30
      %s43 = sld [smem:[#allocation3 + %s42]]
      %s44 = sadd.s32 %s41, %s37
      %s45 = sld [smem:[#allocation3 + %s44]]
      %s46 = ssub.s32 %s43, %s45
      %p47 = scmp.eq.s32.totalorder %s46, 0
      %s49 = sadd.s32 %s48, 1
      %s50 = scalar_select %p47, %s48, %s49
      %p53 = pneg %p47
      %p54 = scmp.eq.s32.totalorder %s22, 3
      %p55 = por %p53, %p54
      %p56 = scmp.ne.s32.totalorder %s48, %s51
      %p57 = scmp.eq.s32.totalorder %s22, 0
      %p58 = por %p56, %p57
      %p59 = scmp.ne.s32.totalorder %s48, %s51
      %p60 = scmp.eq.s32.totalorder %s27, 3
      %p61 = por %p59, %p60
      %p62 = scmp.ne.s32.totalorder %s51, %s52
      %p63 = scmp.eq.s32.totalorder %s27, 0
      %p64 = por %p62, %p63
      %p65 = scmp.ne.s32.totalorder %s51, %s52
      %p66 = scmp.eq.s32.totalorder %s28, 3
      %p67 = por %p65, %p66
      %p69 = scmp.ne.s32.totalorder %s52, %s68
      %p70 = scmp.eq.s32.totalorder %s28, 0
      %p71 = por %p69, %p70
      %s72 = sadd.s32 %s29, %s30
      %s73 = sadd.s32 %s41, %s37
      %s74 = ssub.s32 %s72, %s73
      %p75 = scmp.eq.s32.totalorder %s74, 0
      %s77 = sadd.s32 %s76, 1
      %s78 = scalar_select %p75, %s76, %s77
      %p81 = pneg %p75
      %p82 = scmp.eq.s32.totalorder %s22, 3
      %p83 = por %p81, %p82
      %p84 = scmp.ne.s32.totalorder %s76, %s79
      %p85 = scmp.eq.s32.totalorder %s22, 0
      %p86 = por %p84, %p85
      %p87 = scmp.ne.s32.totalorder %s76, %s79
      %p88 = scmp.eq.s32.totalorder %s27, 3
      %p89 = por %p87, %p88
      %p90 = scmp.ne.s32.totalorder %s79, %s80
      %p91 = scmp.eq.s32.totalorder %s27, 0
      %p92 = por %p90, %p91
      %p93 = scmp.ne.s32.totalorder %s79, %s80
      %p94 = scmp.eq.s32.totalorder %s28, 3
      %p95 = por %p93, %p94
      %p97 = scmp.ne.s32.totalorder %s80, %s96
      %p98 = scmp.eq.s32.totalorder %s28, 0
      %p99 = por %p97, %p98
      %s100 = ssub.s32 %s29, %s41
      %p101 = scmp.eq.s32.totalorder %s100, 0
      %s103 = sadd.s32 %s102, 1
      %s104 = scalar_select %p101, %s102, %s103
      %p107 = pneg %p101
      %p108 = scmp.eq.s32.totalorder %s22, 3
      %p109 = por %p107, %p108
      %p110 = scmp.ne.s32.totalorder %s102, %s105
      %p111 = scmp.eq.s32.totalorder %s22, 0
      %p112 = por %p110, %p111
      %p113 = scmp.ne.s32.totalorder %s102, %s105
      %p114 = scmp.eq.s32.totalorder %s27, 3
      %p115 = por %p113, %p114
      %p116 = scmp.ne.s32.totalorder %s105, %s106
      %p117 = scmp.eq.s32.totalorder %s27, 0
      %p118 = por %p116, %p117
      %p119 = scmp.ne.s32.totalorder %s105, %s106
      %p120 = scmp.eq.s32.totalorder %s28, 3
      %p121 = por %p119, %p120
      %p123 = scmp.ne.s32.totalorder %s106, %s122
      %p124 = scmp.eq.s32.totalorder %s28, 0
      %p125 = por %p123, %p124
      %p126 = scmp.le.s32.totalorder 1, %s22
      %p127 = scmp.lt.s32.totalorder %s22, 5
      %p128 = pnand %p126, %p127
      %p129 = pneg %p128
      // Predicated region
      $region9: #{tpu_custom_call.1} parent=5 // pred_check
        _
      $region10: #{tpu_custom_call.1} parent=5 // pred_check_branch
        %131 = sbr.rel (%p128) target = $region12
      $region11: #{tpu_custom_call.1} parent=5 // pred_region
        %s132 = ssub.s32 %s22, 1
      $region12: #{tpu_custom_call.1} parent=5 // pred_fallthru
        _
      %p133 = scmp.lt.s32.totalorder %s22, 4
      // Predicated region
      $region13: #{tpu_custom_call.1} parent=5 // pred_check
        %p134 = pneg %p133
      $region14: #{tpu_custom_call.1} parent=5 // pred_check_branch
        %136 = sbr.rel (%p134) target = $region16
      $region15: #{tpu_custom_call.1} parent=5 // pred_region
        // Predicated region
        $region17: #{tpu_custom_call.1} parent=15 // pred_check
          %p137 = pneg %p58
        $region18: #{tpu_custom_call.1} parent=15 // pred_check_branch
          %139 = sbr.rel (%p137) target = $region20
        $region19: #{tpu_custom_call.1} parent=15 // pred_region
          %s140 = sand.u32 %s48, 1
          %s141 = scalar_lea.sflag [#allocation5], %s140
          %s142 = sand.u32 %s48, 1
          %s143 = smul.addr %s142, 16
          %s144 = scalar_lea.vmem [#allocation4], %s143
          %s145 = sadd.s32 %s29, %s30
          %s146 = sld [smem:[#allocation3 + %s145]]
          %s147 = smul.u32 2, %s146
          %s149 = ssub.s32 256, 256
          %150 = vsyncadd %s141, %s149
          %s151 = smul.addr %s147, 128
          %s152 = scalar_lea.hbm %s1, %s151
          %s154 = sshll.u32 %s144, 4
          %s155 = int_to_ptr.vmem [resolvable:$true] %s154
          %157 = dma.hbm_to_vmem [thread:$0]  %s152, 256, %s155, %s141
        $region20: #{tpu_custom_call.1} parent=15 // pred_fallthru
          _
        // Predicated region
        $region21: #{tpu_custom_call.1} parent=15 // pred_check
          %p158 = pneg %p86
        $region22: #{tpu_custom_call.1} parent=15 // pred_check_branch
          %160 = sbr.rel (%p158) target = $region24
        $region23: #{tpu_custom_call.1} parent=15 // pred_region
          %s161 = sand.u32 %s76, 1
          %s162 = scalar_lea.sflag [#allocation8], %s161
          %s163 = sand.u32 %s76, 1
          %s164 = smul.addr %s163, 128
          %s165 = scalar_lea.vmem [#allocation7], %s164
          %s166 = sadd.s32 %s29, %s30
          %s168 = ssub.s32 2048, 2048
          %169 = vsyncadd %s162, %s168
          %s170 = smul.addr %s166, 32
          %s171 = smul.addr %s170, 64
          %s172 = scalar_lea.hbm %s2, %s171
          %s173 = sshll.u32 %s165, 4
          %s174 = int_to_ptr.vmem [resolvable:$true] %s173
          %179 = dma.hbm_to_vmem [thread:$0]  %s172, 2048, %s174, %s162, 64, 64, 4
        $region24: #{tpu_custom_call.1} parent=15 // pred_fallthru
          _
      $region16: #{tpu_custom_call.1} parent=5 // pred_fallthru
        _
      %p180 = scmp.le.s32.totalorder 1, %s22
      %p181 = scmp.lt.s32.totalorder %s22, 5
      %p182 = pnand %p180, %p181
      %p183 = pneg %p182
      // Predicated region
      $region25: #{tpu_custom_call.1} parent=5 // pred_check
        _
      $region26: #{tpu_custom_call.1} parent=5 // pred_check_branch
        %185 = sbr.rel (%p182) target = $region28
      $region27: #{tpu_custom_call.1} parent=5 // pred_region
        %s186 = ssub.s32 %s22, 1
        %s187 = sand.u32 %s51, 1
        %s188 = scalar_lea.sflag [#allocation5], %s187
        %s189 = sand.u32 %s51, 1
        %s190 = smul.addr %s189, 16
        %s191 = scalar_lea.vmem [#allocation4], %s190
        // Predicated region
        $region29: #{tpu_custom_call.1} parent=27 // pred_check
          %p192 = pneg %p64
        $region30: #{tpu_custom_call.1} parent=27 // pred_check_branch
          %194 = sbr.rel (%p192) target = $region32
        $region31: #{tpu_custom_call.1} parent=27 // pred_region
          %195 = dma.done %s188, 256
        $region32: #{tpu_custom_call.1} parent=27 // pred_fallthru
          _
        %s196 = sand.u32 %s79, 1
        %s197 = scalar_lea.sflag [#allocation8], %s196
        %s198 = sand.u32 %s79, 1
        %s199 = smul.addr %s198, 128
        %s200 = scalar_lea.vmem [#allocation7], %s199
        // Predicated region
        $region33: #{tpu_custom_call.1} parent=27 // pred_check
          %p201 = pneg %p92
        $region34: #{tpu_custom_call.1} parent=27 // pred_check_branch
          %203 = sbr.rel (%p201) target = $region36
        $region35: #{tpu_custom_call.1} parent=27 // pred_region
          %204 = dma.done %s197, 2048
        $region36: #{tpu_custom_call.1} parent=27 // pred_fallthru
          _
        %s205 = sand.u32 %s51, 1
        %s206 = scalar_lea.sflag [#allocation5], %s205
        %s207 = sand.u32 %s51, 1
        %s208 = smul.addr %s207, 16
        %s209 = scalar_lea.vmem [#allocation4], %s208
        %p210 = pneg %p64
        %p211 = pneg %p61
        %s212 = sand.u32 %s79, 1
        %s213 = scalar_lea.sflag [#allocation8], %s212
        %s214 = sand.u32 %s79, 1
        %s215 = smul.addr %s214, 128
        %s216 = scalar_lea.vmem [#allocation7], %s215
        %p217 = pneg %p92
        %p218 = pneg %p89
        %p219 = pneg %p118
        %p220 = pneg %p115
        %s221 = sand.u32 %s105, 1
        %s222 = scalar_lea.sflag [#allocation6], %s221
        %s223 = sand.u32 %s105, 1
        %s224 = smul.addr %s223, 8
        %s225 = scalar_lea.vmem [#allocation9], %s224
        %s226 = sadd.s32 %s31, %s32
        %s227 = sld [smem:[#allocation3 + %s226]]
        %s228 = smul.u32 2, %s227
        %s229 = sadd.s32 %s31, %s32
        %p230 = scmp.eq.s32.totalorder %s32, 0
        // Predicated region
        $region37: #{tpu_custom_call.1} parent=27 // pred_check
          %p231 = pneg %p230
        $region38: #{tpu_custom_call.1} parent=27 // pred_check_branch
          %233 = sbr.rel (%p231) target = $region40
        $region39: #{tpu_custom_call.1} parent=27 // pred_region
          %234 = vst [vmem:[%s225] sm:$0xff] 0.0
        $region40: #{tpu_custom_call.1} parent=27 // pred_fallthru
          _
        %v235 = vld [vmem:[%s225] sm:$0xff]
        %v236 = vld [vmem:[%s191] sm:$0xff]
        %v237 = vld [vmem:[%s191 + $0x8] sm:$0xff]
        %v238 = vld [vmem:[%s200] sm:$0xf]
        %v239 = vld [vmem:[%s200 + $0x4] sm:$0xf]
        %v240 = vld [vmem:[%s200 + $0x8] sm:$0xf]
        %v241 = vld [vmem:[%s200 + $0xc] sm:$0xf]
        %v242 = vld [vmem:[%s200 + $0x10] sm:$0xf]
        %v243 = vld [vmem:[%s200 + $0x14] sm:$0xf]
        %v244 = vld [vmem:[%s200 + $0x18] sm:$0xf]
        %v245 = vld [vmem:[%s200 + $0x1c] sm:$0xf]
        %v246 = vld [vmem:[%s200 + $0x20] sm:$0xf]
        %v247 = vld [vmem:[%s200 + $0x24] sm:$0xf]
        %v248 = vld [vmem:[%s200 + $0x28] sm:$0xf]
        %v249 = vld [vmem:[%s200 + $0x2c] sm:$0xf]
        %v250 = vld [vmem:[%s200 + $0x30] sm:$0xf]
        %v251 = vld [vmem:[%s200 + $0x34] sm:$0xf]
        %v252 = vld [vmem:[%s200 + $0x38] sm:$0xf]
        %v253 = vld [vmem:[%s200 + $0x3c] sm:$0xf]
        %v254 = vld [vmem:[%s200 + $0x40] sm:$0xf]
        %v255 = vld [vmem:[%s200 + $0x44] sm:$0xf]
        %v256 = vld [vmem:[%s200 + $0x48] sm:$0xf]
        %v257 = vld [vmem:[%s200 + $0x4c] sm:$0xf]
        %v258 = vld [vmem:[%s200 + $0x50] sm:$0xf]
        %v259 = vld [vmem:[%s200 + $0x54] sm:$0xf]
        %v260 = vld [vmem:[%s200 + $0x58] sm:$0xf]
        %v261 = vld [vmem:[%s200 + $0x5c] sm:$0xf]
        %v262 = vld [vmem:[%s200 + $0x60] sm:$0xf]
        %v263 = vld [vmem:[%s200 + $0x64] sm:$0xf]
        %v264 = vld [vmem:[%s200 + $0x68] sm:$0xf]
        %v265 = vld [vmem:[%s200 + $0x6c] sm:$0xf]
        %v266 = vld [vmem:[%s200 + $0x70] sm:$0xf]
        %v267 = vld [vmem:[%s200 + $0x74] sm:$0xf]
        %v268 = vld [vmem:[%s200 + $0x78] sm:$0xf]
        %v269 = vld [vmem:[%s200 + $0x7c] sm:$0xf]
        %v270 = vunpack.c.l.bf16 %v238
        %v271 = vunpack.c.l.bf16 %v239
        %v272 = vunpack.c.l.bf16 %v240
        %v273 = vunpack.c.l.bf16 %v241
        %v274 = vunpack.c.l.bf16 %v242
        %v275 = vunpack.c.l.bf16 %v243
        %v276 = vunpack.c.l.bf16 %v244
        %v277 = vunpack.c.l.bf16 %v245
        %v278 = vunpack.c.l.bf16 %v246
        %v279 = vunpack.c.l.bf16 %v247
        %v280 = vunpack.c.l.bf16 %v248
        %v281 = vunpack.c.l.bf16 %v249
        %v282 = vunpack.c.l.bf16 %v250
        %v283 = vunpack.c.l.bf16 %v251
        %v284 = vunpack.c.l.bf16 %v252
        %v285 = vunpack.c.l.bf16 %v253
        %v286 = vunpack.c.l.bf16 %v254
        %v287 = vunpack.c.l.bf16 %v255
        %v288 = vunpack.c.l.bf16 %v256
        %v289 = vunpack.c.l.bf16 %v257
        %v290 = vunpack.c.l.bf16 %v258
        %v291 = vunpack.c.l.bf16 %v259
        %v292 = vunpack.c.l.bf16 %v260
        %v293 = vunpack.c.l.bf16 %v261
        %v294 = vunpack.c.l.bf16 %v262
        %v295 = vunpack.c.l.bf16 %v263
        %v296 = vunpack.c.l.bf16 %v264
        %v297 = vunpack.c.l.bf16 %v265
        %v298 = vunpack.c.l.bf16 %v266
        %v299 = vunpack.c.l.bf16 %v267
        %v300 = vunpack.c.l.bf16 %v268
        %v301 = vunpack.c.l.bf16 %v269
        %302 = vmatprep.subr.mxu0 0.0
        %303 = vmatpush1.msra.mxu0 %v285
        %304 = vmatprep.subr.mxu0 0.0
        %305 = vmatpush1.msra.mxu0 %v284
        %306 = vmatprep.subr.mxu0 0.0
        %307 = vmatpush1.msra.mxu0 %v283
        %308 = vmatprep.subr.mxu0 0.0
        %309 = vmatpush1.msra.mxu0 %v282
        %310 = vmatprep.subr.mxu0 0.0
        %311 = vmatpush1.msra.mxu0 %v281
        %312 = vmatprep.subr.mxu0 0.0
        %313 = vmatpush1.msra.mxu0 %v280
        %314 = vmatprep.subr.mxu0 0.0
        %315 = vmatpush1.msra.mxu0 %v279
        %316 = vmatprep.subr.mxu0 0.0
        %317 = vmatpush1.msra.mxu0 %v278
        %318 = vmatprep.subr.mxu0 0.0
        %319 = vmatpush1.msra.mxu0 %v277
        %320 = vmatprep.subr.mxu0 0.0
        %321 = vmatpush1.msra.mxu0 %v276
        %322 = vmatprep.subr.mxu0 0.0
        %323 = vmatpush1.msra.mxu0 %v275
        %324 = vmatprep.subr.mxu0 0.0
        %325 = vmatpush1.msra.mxu0 %v274
        %326 = vmatprep.subr.mxu0 0.0
        %327 = vmatpush1.msra.mxu0 %v273
        %328 = vmatprep.subr.mxu0 0.0
        %329 = vmatpush1.msra.mxu0 %v272
        %330 = vmatprep.subr.mxu0 0.0
        %331 = vmatpush1.msra.mxu0 %v271
        %332 = vmatprep.subr.mxu0 0.0
        %333 = vmatpush1.msra.mxu0 %v270
        %334 = vmatprep.subr.mxu0 0.0
        %335 = vmatpush2.msra.mxu0 %v301
        %336 = vmatprep.subr.mxu0 0.0
        %337 = vmatpush2.msra.mxu0 %v300
        %338 = vmatprep.subr.mxu0 0.0
        %339 = vmatpush2.msra.mxu0 %v299
        %340 = vmatprep.subr.mxu0 0.0
        %341 = vmatpush2.msra.mxu0 %v298
        %342 = vmatprep.subr.mxu0 0.0
        %343 = vmatpush2.msra.mxu0 %v297
        %344 = vmatprep.subr.mxu0 0.0
        %345 = vmatpush2.msra.mxu0 %v296
        %346 = vmatprep.subr.mxu0 0.0
        %347 = vmatpush2.msra.mxu0 %v295
        %348 = vmatprep.subr.mxu0 0.0
        %349 = vmatpush2.msra.mxu0 %v294
        %350 = vmatprep.subr.mxu0 0.0
        %351 = vmatpush2.msra.mxu0 %v293
        %352 = vmatprep.subr.mxu0 0.0
        %353 = vmatpush2.msra.mxu0 %v292
        %354 = vmatprep.subr.mxu0 0.0
        %355 = vmatpush2.msra.mxu0 %v291
        %356 = vmatprep.subr.mxu0 0.0
        %357 = vmatpush2.msra.mxu0 %v290
        %358 = vmatprep.subr.mxu0 0.0
        %359 = vmatpush2.msra.mxu0 %v289
        %360 = vmatprep.subr.mxu0 0.0
        %361 = vmatpush2.msra.mxu0 %v288
        %362 = vmatprep.subr.mxu0 0.0
        %363 = vmatpush2.msra.mxu0 %v287
        %364 = vmatprep.subr.mxu0 0.0
        %365 = vmatpush2.msra.mxu0 %v286
        %366 = vmatprep.mubr.f32.mxu0 %v237
        %367 = vmatmul.mubr.f32.gmra.mxu0 %v236
        %v368 = vpop.f32.mrf.mxu0
        %v369 = vadd.f32 0.0, %v368
        %v370 = vpop.f32.mrf.mxu0
        %371 = vdwg.mxu0
        %v372 = vadd.f32 %v235, %v369
        %373 = vst [vmem:[%s225] sm:$0xff] %v372
        %s374 = sand.u32 %s105, 1
        %s375 = scalar_lea.sflag [#allocation6], %s374
        %s376 = sand.u32 %s105, 1
        %s377 = smul.addr %s376, 8
        %s378 = scalar_lea.vmem [#allocation9], %s377
        // Predicated region
        $region41: #{tpu_custom_call.1} parent=27 // pred_check
          %p379 = pneg %p115
        $region42: #{tpu_custom_call.1} parent=27 // pred_check_branch
          %381 = sbr.rel (%p379) target = $region44
        $region43: #{tpu_custom_call.1} parent=27 // pred_region
          %s383 = ssub.s32 128, 128
          %384 = vsyncadd %s375, %s383
          %s385 = smul.addr %s31, 128
          %s386 = scalar_lea.hbm %s3, %s385
          %s388 = sshll.u32 %s378, 4
          %s389 = int_to_ptr.vmem [resolvable:$true] %s388
          %391 = dma.vmem_to_hbm [thread:$0]  %s389, 128, %s386, %s375
        $region44: #{tpu_custom_call.1} parent=27 // pred_fallthru
          _
      $region28: #{tpu_custom_call.1} parent=5 // pred_fallthru
        _
      %p392 = scmp.le.s32.totalorder 2, %s22
      // Predicated region
      $region45: #{tpu_custom_call.1} parent=5 // pred_check
        %p393 = pneg %p392
      $region46: #{tpu_custom_call.1} parent=5 // pred_check_branch
        %395 = sbr.rel (%p393) target = $region48
      $region47: #{tpu_custom_call.1} parent=5 // pred_region
        %s396 = ssub.s32 %s22, 2
        // Predicated region
        $region49: #{tpu_custom_call.1} parent=47 // pred_check
          %p397 = pneg %p121
        $region50: #{tpu_custom_call.1} parent=47 // pred_check_branch
          %399 = sbr.rel (%p397) target = $region52
        $region51: #{tpu_custom_call.1} parent=47 // pred_region
          %s400 = sand.u32 %s106, 1
          %s401 = scalar_lea.sflag [#allocation6], %s400
          %s402 = sand.u32 %s106, 1
          %s403 = smul.addr %s402, 8
          %s404 = scalar_lea.vmem [#allocation9], %s403
          %405 = dma.done %s401, 128
        $region52: #{tpu_custom_call.1} parent=47 // pred_fallthru
          _
      $region48: #{tpu_custom_call.1} parent=5 // pred_fallthru
        _
    $region6: #{tpu_custom_call.1} parent=1 // loop_footer
      %s26 = sadd.s32 1, %s22
    $region7: #{tpu_custom_call.1} parent=1 // loop_footer_branch
      %21 = sbr.rel target = $region3
    $region8: #{tpu_custom_call.1} parent=1 // loop_exit
      _
    %406 = vsyncpa [#allocation5], 1
    %s407 = scalar_lea.sflag [#allocation5], 1
    %408 = vsyncpa %s407, 1
    %409 = vsyncpa [#allocation8], 1
    %s410 = scalar_lea.sflag [#allocation8], 1
    %411 = vsyncpa %s410, 1
    %412 = vsyncpa [#allocation6], 1
    %s413 = scalar_lea.sflag [#allocation6], 1
    %414 = vsyncpa %s413, 1

</llo_original>
